<compile_context>
chip_gen: v7x
topology: tpu7x:2x2x1
jax: 0.10.0
libtpu: 0.0.40
codegen_flags: <defaults>
</compile_context>

<pallas_src>
import math
import functools

import jax
import jax.numpy as jnp
from jax import lax
from jax.experimental import pallas as pl
from jax.experimental.pallas import tpu as pltpu


_INV_SQRT2 = 1.0 / math.sqrt(2.0)
_SQRT_2_OVER_PI = math.sqrt(2.0 / math.pi)


def _round_up(x, m):
    return (x + m - 1) // m * m


def _vmem_budget():
    """Generation-aware (tile_budget, scoped_limit_cap, default_block_rows)."""
    cap = None
    try:
        info = pltpu.get_tpu_info()
        cap = getattr(info, "vmem_capacity_bytes", None)
    except Exception:
        cap = None
    if cap is None:
        cap = 64 * 1024 * 1024              # conservative: assume v7x-sized VMEM
    if cap >= 100 * 1024 * 1024:            # v5e / v6e: 128 MiB physical VMEM
        return 96 * 1024 * 1024, 110 * 1024 * 1024, 1024
    # v7x: 64 MiB physical VMEM per TensorCore
    return 40 * 1024 * 1024, 56 * 1024 * 1024, 512


def _make_kernel(approx_gelu):
    def kernel(x_ref, w1_ref, b1_ref, w2_ref, b2_ref, o_ref, acc_ref):
        # grid = (i: row tiles [parallel], j: output-column tiles [parallel],
        #         k: d_ff tiles [arbitrary reduction])
        # x_ref : (tm, dim_p)   w1_ref: (dim_p, tk)  b1_ref: (1, tk)   [f32]
        # w2_ref: (tk, tn)      b2_ref: (1, tn) [f32]
        # o_ref : (tm, tn)      acc_ref: (tm, tn) f32, resident across k.
        k = pl.program_id(2)

        @pl.when(k == 0)
        def _():
            acc_ref[...] = jnp.zeros_like(acc_ref)

        # linear_1 on this d_ff tile (MXU, f32 accumulation)
        h = jnp.dot(x_ref[...], w1_ref[...], preferred_element_type=jnp.float32)
        h = h + b1_ref[...]

        if approx_gelu:
            # tanh approximation: EUP tanh frees the VALU slot on v6e/v7x.
            h = 0.5 * h * (1.0 + jnp.tanh(_SQRT_2_OVER_PI *
                                          (h + 0.044715 * h * h * h)))
        else:
            # exact erf-based GELU in f32 (matches torch.nn.functional.gelu default)
            h = 0.5 * h * (1.0 + lax.erf(h * _INV_SQRT2))

        # dropout -> identity (eval mode)
        # TODO(synk): training-mode dropout mask via pltpu.prng_random_bits if needed.

        # partial linear_2: accumulate this d_ff tile's contribution
        acc_ref[...] += jnp.dot(h.astype(w2_ref.dtype), w2_ref[...],
                                preferred_element_type=jnp.float32)

        @pl.when(k == pl.num_programs(2) - 1)
        def _():
            o_ref[...] = (acc_ref[...] + b2_ref[...]).astype(o_ref.dtype)

    return kernel


def _choose_tiles(M_p, dim_p, d_ff_p, block_rows, block_dff, block_cols,
                  cd_bytes, out_bytes, budget):
    """Pick (tm, tn, tk): rows first (arithmetic intensity), then largest divisor tk."""
    def row_bytes(tm, tn):
        return (2 * tm * dim_p * cd_bytes   # x row tile (double-buffered)
                + 2 * tm * tn * out_bytes   # out tile (double-buffered)
                + tm * tn * 4               # f32 accumulator scratch
                + 2 * tn * 4)               # b2 tile

    def k_bytes(tm, tn, tk):
        return (2 * dim_p * tk * cd_bytes   # W1 tile (double-buffered)
                + 2 * tk * tn * cd_bytes    # W2 tile (double-buffered)
                + 2 * tk * 4                # b1 tile (f32)
                + tm * tk * 4)              # f32 hidden intermediate

    tm_cap = max(8, (min(block_rows, M_p) // 8) * 8)

    # Output-column tile sizes: multiples of 128 that divide dim_p exactly
    # (lane-dense stores, no extra zero padding of W2/out). Prefer a single tile.
    tn_choices = sorted((t for t in range(128, dim_p + 1, 128) if dim_p % t == 0),
                        reverse=True)
    if block_cols:
        filt = [t for t in tn_choices if t <= block_cols]
        tn_choices = filt if filt else tn_choices[-1:]

    tm = tn = None
    for tn_c in tn_choices:
        tm_c = tm_cap
        while tm_c > 256 and row_bytes(tm_c, tn_c) > budget // 2:
            tm_c = max(256, ((tm_c // 2) // 8) * 8)
        if row_bytes(tm_c, tn_c) <= budget // 2:
            tm, tn = tm_c, tn_c
            break
    if tm is None:                          # last resort: shrink rows below 256
        tn = tn_choices[-1]
        tm = tm_cap
        while tm > 8 and row_bytes(tm, tn) + k_bytes(tm, tn, 128) > budget:
            tm = max(8, ((tm // 2) // 8) * 8)

    # d_ff tile: the largest multiple of 128 dividing d_ff_p that fits the budget.
    tk_choices = [t for t in range(128, d_ff_p + 1, 128) if d_ff_p % t == 0]
    if block_dff:
        filt = [t for t in tk_choices if t <= block_dff]
        tk_choices = filt if filt else tk_choices[:1]
    tk = tk_choices[0]
    for cand in tk_choices:                 # ascending -> keep the largest that fits
        if row_bytes(tm, tn) + k_bytes(tm, tn, cand) <= budget:
            tk = cand
    return tm, tn, tk


def _ffn_padded(xp, w1p, b1p, w2p, b2p, out_dtype, approx_gelu,
                block_rows, block_dff, block_cols):
    """All operands already lane/sublane-aligned and cast to the compute dtype."""
    M_p, dim_p = xp.shape
    d_ff_p = w1p.shape[1]
    cd_bytes = jnp.dtype(xp.dtype).itemsize
    out_bytes = jnp.dtype(out_dtype).itemsize

    budget, limit_cap, default_rows = _vmem_budget()
    if block_rows is None:
        block_rows = default_rows

    tm, tn, tk = _choose_tiles(M_p, dim_p, d_ff_p, block_rows, block_dff,
                               block_cols, cd_bytes, out_bytes, budget)

    n_row_tiles = pl.cdiv(M_p, tm)
    n_col_tiles = dim_p // tn
    grid = (n_row_tiles, n_col_tiles, d_ff_p // tk)

    # Explicit VMEM limit derived from the actual tile working set.
    est = (2 * tm * dim_p * cd_bytes + 2 * tm * tn * out_bytes + tm * tn * 4
           + 2 * tn * 4 + 2 * dim_p * tk * cd_bytes + 2 * tk * tn * cd_bytes
           + 2 * tk * 4 + tm * tk * 4)
    vmem_limit = int(min(limit_cap, max(32 * 1024 * 1024, (est * 3) // 2)))

    # Weight traffic is paid once per row tile (W1/x also once per column tile).
    cost = pl.CostEstimate(
        flops=2 * M_p * dim_p * d_ff_p * (n_col_tiles + 1),
        transcendentals=M_p * d_ff_p * n_col_tiles,
        bytes_accessed=(M_p * dim_p * cd_bytes * n_col_tiles
                        + dim_p * d_ff_p * cd_bytes * n_row_tiles * n_col_tiles
                        + d_ff_p * dim_p * cd_bytes * n_row_tiles
                        + d_ff_p * 4 * n_row_tiles * n_col_tiles
                        + dim_p * 4 * n_row_tiles
                        + M_p * dim_p * out_bytes))

    return pl.pallas_call(
        _make_kernel(approx_gelu),
        out_shape=jax.ShapeDtypeStruct((M_p, dim_p), out_dtype),
        grid_spec=pltpu.PrefetchScalarGridSpec(
            num_scalar_prefetch=0,
            grid=grid,
            in_specs=[
                pl.BlockSpec((tm, dim_p), lambda i, j, k: (i, 0)),   # x row tile
                pl.BlockSpec((dim_p, tk), lambda i, j, k: (0, k)),   # W1 d_ff tile
                pl.BlockSpec((1, tk), lambda i, j, k: (0, k)),       # b1 tile
                pl.BlockSpec((tk, tn), lambda i, j, k: (k, j)),      # W2 (d_ff, col) tile
                pl.BlockSpec((1, tn), lambda i, j, k: (0, j)),       # b2 col tile
            ],
            out_specs=pl.BlockSpec((tm, tn), lambda i, j, k: (i, j)),
            scratch_shapes=[pltpu.VMEM((tm, tn), jnp.float32)],
        ),
        compiler_params=pltpu.CompilerParams(
            dimension_semantics=("parallel", "parallel", "arbitrary"),
            vmem_limit_bytes=vmem_limit),
        cost_estimate=cost,
    )(xp, w1p, b1p, w2p, b2p)


def _pad_cast(a, pads, dtype):
    """jnp.pad / astype only when they are not no-ops."""
    if any(hi for _, hi in pads):
        a = jnp.pad(a, pads)
    if a.dtype != jnp.dtype(dtype):
        a = a.astype(dtype)
    return a


@functools.partial(jax.jit,
                   static_argnames=("block_rows", "block_dff", "block_cols",
                                    "compute_dtype", "approx_gelu"))
def feed_forward(x, w1, b1, w2, b2, block_rows=None, block_dff=None,
                 block_cols=None, compute_dtype=jnp.bfloat16, approx_gelu=False):
    """x: [..., dim] -> [..., dim]; weights stored (in, out): y = gelu(xW1+b1)W2+b2.

    Default fast path uses bf16 MXU operands (activations AND weights are cast to
    bf16) with f32 accumulation and f32 GELU; pass compute_dtype=jnp.float32 for an
    exact-precision forward. approx_gelu=True uses the tanh GELU approximation.
    """
    *lead, dim = x.shape
    d_ff = w1.shape[1]
    M = math.prod(lead) if lead else 1

    out_dtype = x.dtype
    cd = jnp.dtype(compute_dtype) if compute_dtype is not None else jnp.dtype(x.dtype)

    dim_p = _round_up(dim, 128)
    d_ff_p = _round_up(d_ff, 128)
    M_p = _round_up(M, 8)

    xp = _pad_cast(x.reshape(M, dim), ((0, M_p - M), (0, dim_p - dim)), cd)
    w1p = _pad_cast(w1, ((0, dim_p - dim), (0, d_ff_p - d_ff)), cd)
    w2p = _pad_cast(w2, ((0, d_ff_p - d_ff), (0, dim_p - dim)), cd)
    b1p = _pad_cast(b1, ((0, 0), (0, d_ff_p - d_ff)), jnp.float32)
    b2p = _pad_cast(b2, ((0, 0), (0, dim_p - dim)), jnp.float32)

    out2d = _ffn_padded(xp, w1p, b1p, w2p, b2p, out_dtype, approx_gelu,
                        block_rows, block_dff, block_cols)
    out = out2d[:M, :dim]
    return out.reshape(*lead, dim) if lead else out.reshape(dim)


def make_feed_forward(w1, b1, w2, b2, compute_dtype=jnp.bfloat16,
                      approx_gelu=False, block_rows=None, block_dff=None,
                      block_cols=None):
    """Hoist the per-call weight pad + cast: prepare padded compute-dtype weights once
    and return a jitted closure that only pads/casts the activations per call."""
    dim, d_ff = w1.shape
    dim_p = _round_up(dim, 128)
    d_ff_p = _round_up(d_ff, 128)
    cd = jnp.dtype(compute_dtype) if compute_dtype is not None else jnp.dtype(w1.dtype)

    w1p = _pad_cast(jnp.asarray(w1), ((0, dim_p - dim), (0, d_ff_p - d_ff)), cd)
    w2p = _pad_cast(jnp.asarray(w2), ((0, d_ff_p - d_ff), (0, dim_p - dim)), cd)
    b1p = _pad_cast(jnp.asarray(b1), ((0, 0), (0, d_ff_p - d_ff)), jnp.float32)
    b2p = _pad_cast(jnp.asarray(b2), ((0, 0), (0, dim_p - dim)), jnp.float32)

    @jax.jit
    def apply(x):
        *lead, xdim = x.shape
        M = math.prod(lead) if lead else 1
        M_p = _round_up(M, 8)
        xp = _pad_cast(x.reshape(M, xdim),
                       ((0, M_p - M), (0, dim_p - xdim)), w1p.dtype)
        out2d = _ffn_padded(xp, w1p, b1p, w2p, b2p, x.dtype, approx_gelu,
                            block_rows, block_dff, block_cols)
        out = out2d[:M, :xdim]
        return out.reshape(*lead, xdim) if lead else out.reshape(xdim)

    return apply


def init_params(key, dim, d_ff, dtype=jnp.float32):
    """Deterministic init matching nn.Linear's U(-1/sqrt(fan_in), 1/sqrt(fan_in))."""
    k1, k2, k3, k4 = jax.random.split(key, 4)
    bound1 = 1.0 / math.sqrt(dim)
    bound2 = 1.0 / math.sqrt(d_ff)
    # stored as (in, out) so the kernel does x @ W  (== x @ W_torch.T)
    w1 = jax.random.uniform(k1, (dim, d_ff), dtype, -bound1, bound1)
    b1 = jax.random.uniform(k2, (1, d_ff), dtype, -bound1, bound1)
    w2 = jax.random.uniform(k3, (d_ff, dim), dtype, -bound2, bound2)
    b2 = jax.random.uniform(k4, (1, dim), dtype, -bound2, bound2)
    return w1, b1, w2, b2


def _reference(x, w1, b1, w2, b2):
    dim = x.shape[-1]
    h = x.reshape(-1, dim) @ w1 + b1
    h = 0.5 * h * (1.0 + lax.erf(h / math.sqrt(2.0)))
    y = h @ w2 + b2
    return y.reshape(x.shape)


if __name__ == "__main__":
    key = jax.random.PRNGKey(0)
    kx, kp, k2 = jax.random.split(key, 3)

    # Module-default small shape: dim=32, d_ff=128, batch=2, seq=8.
    B, S, dim, d_ff = 2, 8, 32, 128
    x = jax.random.normal(kx, (B, S, dim), jnp.float32)
    w1, b1, w2, b2 = init_params(kp, dim, d_ff)
    ref = _reference(x, w1, b1, w2, b2)

    # 1) exact-precision path (f32 MXU operands)
    out_f32 = jax.block_until_ready(
        feed_forward(x, w1, b1, w2, b2, compute_dtype=jnp.float32))
    assert out_f32.shape == x.shape
    assert jnp.allclose(out_f32, ref, atol=1e-5, rtol=1e-5), "f32 mismatch vs reference"

    # 2) default fast path: bf16 MXU operands, f32 accumulation / f32 GELU
    out_bf16 = jax.block_until_ready(feed_forward(x, w1, b1, w2, b2))
    assert jnp.allclose(out_bf16, ref, atol=5e-2, rtol=5e-2), "bf16 mismatch vs reference"

    # 3) multi-tile grid: 2 row tiles x 2 column tiles x 4 d_ff tiles (f32, tight tol)
    B2, S2, dim2, d_ff2 = 2, 128, 256, 512
    kx2, kp2 = jax.random.split(k2)
    x2 = jax.random.normal(kx2, (B2, S2, dim2), jnp.float32)
    p2 = init_params(kp2, dim2, d_ff2)
    out2 = jax.block_until_ready(
        feed_forward(x2, *p2, block_rows=128, block_dff=128, block_cols=128,
                     compute_dtype=jnp.float32))
    ref2 = _reference(x2, *p2)
    assert jnp.allclose(out2, ref2, atol=1e-4, rtol=1e-4), "tiled mismatch vs reference"

    # 4) pre-padded / pre-cast weights (per-call pad/cast hoisted out of the hot path)
    ffn = make_feed_forward(w1, b1, w2, b2)          # bf16 fast path
    out_prep = jax.block_until_ready(ffn(x))
    assert jnp.allclose(out_prep, ref, atol=5e-2, rtol=5e-2), "prepared-weight mismatch"

    print("KERNEL_OK")
</pallas_src>

<mosaic_0001>
module attributes {stable_mosaic.version = 11 : i64} {
  func.func @kernel(%arg0: i32, %arg1: i32, %arg2: i32, %arg3: memref<16x128xf32, #tpu.memory_space<vmem>>, %arg4: memref<128x128xf32, #tpu.memory_space<vmem>>, %arg5: memref<1x128xf32, #tpu.memory_space<vmem>>, %arg6: memref<128x128xf32, #tpu.memory_space<vmem>>, %arg7: memref<1x128xf32, #tpu.memory_space<vmem>>, %arg8: memref<16x128xf32, #tpu.memory_space<vmem>>, %arg9: memref<16x128xf32, #tpu.memory_space<vmem>>) attributes {dimension_semantics = [#tpu.dimension_semantics<parallel>, #tpu.dimension_semantics<parallel>, #tpu.dimension_semantics<arbitrary>], iteration_bounds = array<i64: 1, 1, 1>, scalar_prefetch = 0 : i64, scratch_operands = 1 : i64, tpu.core_type = #tpu.core_type<tc>, window_params = [{transform_indices = @transform_0, window_bounds = array<i64: 16, 128>}, {transform_indices = @transform_1, window_bounds = array<i64: 128, 128>}, {transform_indices = @transform_2, window_bounds = array<i64: 1, 128>}, {transform_indices = @transform_3, window_bounds = array<i64: 128, 128>}, {transform_indices = @transform_4, window_bounds = array<i64: 1, 128>}, {transform_indices = @transform_5, window_bounds = array<i64: 16, 128>}]} {
    %c0_i32 = arith.constant 0 : i32
    %0 = arith.cmpi eq, %arg2, %c0_i32 : i32
    %1 = arith.extui %0 : i1 to i32
    %c0_i32_0 = arith.constant 0 : i32
    %2 = arith.cmpi ne, %1, %c0_i32_0 : i32
    scf.if %2 {
      %cst_18 = arith.constant 0.000000e+00 : f32
      %25 = vector.broadcast %cst_18 : f32 to vector<16x128xf32>
      %c0_19 = arith.constant 0 : index
      %c0_20 = arith.constant 0 : index
      %26 = vector.load %arg9[%c0_19, %c0_20] : memref<16x128xf32, #tpu.memory_space<vmem>>, vector<16x128xf32>
      tpu.vector_store %arg9[%c0_19, %c0_20], %25 {strides = array<i32>} : memref<16x128xf32, #tpu.memory_space<vmem>>, vector<16x128xf32>,
    } else {
    }
    %c0 = arith.constant 0 : index
    %c0_1 = arith.constant 0 : index
    %3 = vector.load %arg3[%c0, %c0_1] : memref<16x128xf32, #tpu.memory_space<vmem>>, vector<16x128xf32>
    %c0_2 = arith.constant 0 : index
    %c0_3 = arith.constant 0 : index
    %4 = vector.load %arg4[%c0_2, %c0_3] : memref<128x128xf32, #tpu.memory_space<vmem>>, vector<128x128xf32>
    %cst = arith.constant dense<0.000000e+00> : vector<16x128xf32>
    %5 = tpu.matmul %3, %4, %cst {dimension_numbers = #tpu.dot_dimension_numbers<[1], [0], [0], [1], [0, 0, 1, 1], [], []>} : vector<16x128xf32>, vector<128x128xf32>, vector<16x128xf32> -> vector<16x128xf32>
    %c0_4 = arith.constant 0 : index
    %c0_5 = arith.constant 0 : index
    %6 = vector.load %arg5[%c0_4, %c0_5] : memref<1x128xf32, #tpu.memory_space<vmem>>, vector<1x128xf32>
    %7 = vector.broadcast %6 : vector<1x128xf32> to vector<16x128xf32>
    %8 = arith.addf %5, %7 : vector<16x128xf32>
    %cst_6 = arith.constant 5.000000e-01 : f32
    %9 = vector.broadcast %cst_6 : f32 to vector<16x128xf32>
    %10 = arith.mulf %9, %8 : vector<16x128xf32>
    %cst_7 = arith.constant 0.707106769 : f32
    %11 = vector.broadcast %cst_7 : f32 to vector<16x128xf32>
    %12 = arith.mulf %8, %11 : vector<16x128xf32>
    %13 = math.erf %12 : vector<16x128xf32>
    %cst_8 = arith.constant 1.000000e+00 : f32
    %14 = vector.broadcast %cst_8 : f32 to vector<16x128xf32>
    %15 = arith.addf %14, %13 : vector<16x128xf32>
    %16 = arith.mulf %10, %15 : vector<16x128xf32>
    %c0_9 = arith.constant 0 : index
    %c0_10 = arith.constant 0 : index
    %17 = vector.load %arg9[%c0_9, %c0_10] : memref<16x128xf32, #tpu.memory_space<vmem>>, vector<16x128xf32>
    %c0_11 = arith.constant 0 : index
    %c0_12 = arith.constant 0 : index
    %18 = vector.load %arg6[%c0_11, %c0_12] : memref<128x128xf32, #tpu.memory_space<vmem>>, vector<128x128xf32>
    %cst_13 = arith.constant dense<0.000000e+00> : vector<16x128xf32>
    %19 = tpu.matmul %16, %18, %cst_13 {dimension_numbers = #tpu.dot_dimension_numbers<[1], [0], [0], [1], [0, 0, 1, 1], [], []>} : vector<16x128xf32>, vector<128x128xf32>, vector<16x128xf32> -> vector<16x128xf32>
    %20 = arith.addf %17, %19 : vector<16x128xf32>
    %c0_14 = arith.constant 0 : index
    %c0_15 = arith.constant 0 : index
    %21 = vector.load %arg9[%c0_14, %c0_15] : memref<16x128xf32, #tpu.memory_space<vmem>>, vector<16x128xf32>
    tpu.vector_store %arg9[%c0_14, %c0_15], %20 {strides = array<i32>} : memref<16x128xf32, #tpu.memory_space<vmem>>, vector<16x128xf32>,
    %c0_i32_16 = arith.constant 0 : i32
    %22 = arith.cmpi eq, %arg2, %c0_i32_16 : i32
    %23 = arith.extui %22 : i1 to i32
    %c0_i32_17 = arith.constant 0 : i32
    %24 = arith.cmpi ne, %23, %c0_i32_17 : i32
    scf.if %24 {
      %c0_18 = arith.constant 0 : index
      %c0_19 = arith.constant 0 : index
      %25 = vector.load %arg9[%c0_18, %c0_19] : memref<16x128xf32, #tpu.memory_space<vmem>>, vector<16x128xf32>
      %c0_20 = arith.constant 0 : index
      %c0_21 = arith.constant 0 : index
      %26 = vector.load %arg7[%c0_20, %c0_21] : memref<1x128xf32, #tpu.memory_space<vmem>>, vector<1x128xf32>
      %27 = vector.broadcast %26 : vector<1x128xf32> to vector<16x128xf32>
      %28 = arith.addf %25, %27 : vector<16x128xf32>
      %c0_22 = arith.constant 0 : index
      %c0_23 = arith.constant 0 : index
      %29 = vector.load %arg8[%c0_22, %c0_23] : memref<16x128xf32, #tpu.memory_space<vmem>>, vector<16x128xf32>
      tpu.vector_store %arg8[%c0_22, %c0_23], %28 {strides = array<i32>} : memref<16x128xf32, #tpu.memory_space<vmem>>, vector<16x128xf32>,
    } else {
    }
    return
  }
  func.func @transform_0(%arg0: i32, %arg1: i32, %arg2: i32) -> (i32, i32) {
    %c0_i32 = arith.constant 0 : i32
    %c0_i32_0 = arith.constant 0 : i32
    return %arg0, %c0_i32 : i32, i32
  }
  func.func @transform_1(%arg0: i32, %arg1: i32, %arg2: i32) -> (i32, i32) {
    %c0_i32 = arith.constant 0 : i32
    %c0_i32_0 = arith.constant 0 : i32
    return %c0_i32, %arg2 : i32, i32
  }
  func.func @transform_2(%arg0: i32, %arg1: i32, %arg2: i32) -> (i32, i32) {
    %c0_i32 = arith.constant 0 : i32
    %c0_i32_0 = arith.constant 0 : i32
    return %c0_i32, %arg2 : i32, i32
  }
  func.func @transform_3(%arg0: i32, %arg1: i32, %arg2: i32) -> (i32, i32) {
    %c0_i32 = arith.constant 0 : i32
    return %arg2, %arg1 : i32, i32
  }
  func.func @transform_4(%arg0: i32, %arg1: i32, %arg2: i32) -> (i32, i32) {
    %c0_i32 = arith.constant 0 : i32
    %c0_i32_0 = arith.constant 0 : i32
    return %c0_i32, %arg1 : i32, i32
  }
  func.func @transform_5(%arg0: i32, %arg1: i32, %arg2: i32) -> (i32, i32) {
    %c0_i32 = arith.constant 0 : i32
    return %arg0, %arg1 : i32, i32
  }
}

</mosaic_0001>

<llo_original>
// kernel: feed_forward.1
$region0: #{feed_forward.1}
  #allocation0 [shape = 'u32[]', space=smem, size = 0x4, offset = 0x4, fixed_abs, tag = 'smem constant byte address 0x4 - core index']
  #allocation1 [shape = 'u32[144,128]{1,0:T(1,128)}', space=vmem, size = 0x12000, scoped, tag = 'internal scratch']
  #allocation2 [shape = 'f32[16,128]{1,0:T(8,128)}', space=vmem, size = 0x2000, scoped, tag = 'scratch operand']
  %s0 = inlined_call_operand.vmem [shape: f32[16,128], index: 0, kind: input, shape index: {}]
  %s1 = inlined_call_operand.vmem [shape: f32[128,128], index: 1, kind: input, shape index: {}]
  %s2 = inlined_call_operand.vmem [shape: f32[1,128], index: 2, kind: input, shape index: {}]
  %s3 = inlined_call_operand.vmem [shape: f32[128,128], index: 3, kind: input, shape index: {}]
  %s4 = inlined_call_operand.vmem [shape: f32[1,128], index: 4, kind: input, shape index: {}]
  %s5 = inlined_call_operand.vmem [shape: f32[16,128], index: 5, kind: output, shape index: {}]
  %s6 = sld [smem:[#allocation0]]
  $region38: #{feed_forward.1} parent=0
    _
  %s8 = ssub.s32 1, %s6
  %s9 = scalar_select 0, %s8, %s6
  // Predicated region
  $region2: #{feed_forward.1} parent=0 // pred_check
    _
  $region3: #{feed_forward.1} parent=0 // pred_check_branch
    %11 = sbr.rel (0) target = $region5
  $region4: #{feed_forward.1} parent=0 // pred_region
    _
  $region5: #{feed_forward.1} parent=0 // pred_fallthru
    _
  // Predicated region
  $region6: #{feed_forward.1} parent=0 // pred_check
    _
  $region7: #{feed_forward.1} parent=0 // pred_check_branch
    %13 = sbr.rel (0) target = $region9
  $region8: #{feed_forward.1} parent=0 // pred_region
    _
  $region9: #{feed_forward.1} parent=0 // pred_fallthru
    _
  // Predicated region
  $region10: #{feed_forward.1} parent=0 // pred_check
    _
  $region11: #{feed_forward.1} parent=0 // pred_check_branch
    %15 = sbr.rel (0) target = $region13
  $region12: #{feed_forward.1} parent=0 // pred_region
    _
  $region13: #{feed_forward.1} parent=0 // pred_fallthru
    _
  // Predicated region
  $region14: #{feed_forward.1} parent=0 // pred_check
    _
  $region15: #{feed_forward.1} parent=0 // pred_check_branch
    %17 = sbr.rel (0) target = $region17
  $region16: #{feed_forward.1} parent=0 // pred_region
    _
  $region17: #{feed_forward.1} parent=0 // pred_fallthru
    _
  // Predicated region
  $region18: #{feed_forward.1} parent=0 // pred_check
    _
  $region19: #{feed_forward.1} parent=0 // pred_check_branch
    %19 = sbr.rel (0) target = $region21
  $region20: #{feed_forward.1} parent=0 // pred_region
    _
  $region21: #{feed_forward.1} parent=0 // pred_fallthru
    _
  %p20 = scmp.eq.s32.totalorder 0, 0
  // Predicated region
  $region22: #{feed_forward.1} parent=0 // pred_check
    %p21 = pneg %p20
  $region23: #{feed_forward.1} parent=0 // pred_check_branch
    %23 = sbr.rel (%p21) target = $region25
  $region24: #{feed_forward.1} parent=0 // pred_region
    %24 = vst [vmem:[#allocation2] sm:$0xff] 0.0
    %25 = vst [vmem:[#allocation2 + $0x8] sm:$0xff] 0.0
  $region25: #{feed_forward.1} parent=0 // pred_fallthru
    _
  %v26 = vld [vmem:[%s0] sm:$0xff]
  %v27 = vld [vmem:[%s0 + $0x8] sm:$0xff]
  %v28 = vld [vmem:[%s1] sm:$0xff]
  %v29 = vld [vmem:[%s1 + $0x8] sm:$0xff]
  %v30 = vld [vmem:[%s1 + $0x10] sm:$0xff]
  %v31 = vld [vmem:[%s1 + $0x18] sm:$0xff]
  %v32 = vld [vmem:[%s1 + $0x20] sm:$0xff]
  %v33 = vld [vmem:[%s1 + $0x28] sm:$0xff]
  %v34 = vld [vmem:[%s1 + $0x30] sm:$0xff]
  %v35 = vld [vmem:[%s1 + $0x38] sm:$0xff]
  %v36 = vld [vmem:[%s1 + $0x40] sm:$0xff]
  %v37 = vld [vmem:[%s1 + $0x48] sm:$0xff]
  %v38 = vld [vmem:[%s1 + $0x50] sm:$0xff]
  %v39 = vld [vmem:[%s1 + $0x58] sm:$0xff]
  %v40 = vld [vmem:[%s1 + $0x60] sm:$0xff]
  %v41 = vld [vmem:[%s1 + $0x68] sm:$0xff]
  %v42 = vld [vmem:[%s1 + $0x70] sm:$0xff]
  %v43 = vld [vmem:[%s1 + $0x78] sm:$0xff]
  %v44 = vld [vmem:[%s2] sm:$0x1]
  %v46 = vlaneseq
  %v47 = vshrl.u32 %v46, 7
  %v48 = vsub.s32 0, %v47
  %v49 = vrot.slane %v44, %v48
  %51 = vmatprep.subr.mxu0 0.0
  %52 = vmatpush1.msra.mxu0 %v28
  %53 = vmatprep.subr.mxu0 0.0
  %54 = vmatpush1.msra.mxu0 %v29
  %55 = vmatprep.subr.mxu0 0.0
  %56 = vmatpush1.msra.mxu0 %v30
  %57 = vmatprep.subr.mxu0 0.0
  %58 = vmatpush1.msra.mxu0 %v31
  %59 = vmatprep.subr.mxu0 0.0
  %60 = vmatpush1.msra.mxu0 %v32
  %61 = vmatprep.subr.mxu0 0.0
  %62 = vmatpush1.msra.mxu0 %v33
  %63 = vmatprep.subr.mxu0 0.0
  %64 = vmatpush1.msra.mxu0 %v34
  %65 = vmatprep.subr.mxu0 0.0
  %66 = vmatpush1.msra.mxu0 %v35
  %67 = vmatprep.subr.mxu0 0.0
  %68 = vmatpush1.msra.mxu0 %v36
  %69 = vmatprep.subr.mxu0 0.0
  %70 = vmatpush1.msra.mxu0 %v37
  %71 = vmatprep.subr.mxu0 0.0
  %72 = vmatpush1.msra.mxu0 %v38
  %73 = vmatprep.subr.mxu0 0.0
  %74 = vmatpush1.msra.mxu0 %v39
  %75 = vmatprep.subr.mxu0 0.0
  %76 = vmatpush1.msra.mxu0 %v40
  %77 = vmatprep.subr.mxu0 0.0
  %78 = vmatpush1.msra.mxu0 %v41
  %79 = vmatprep.subr.mxu0 0.0
  %80 = vmatpush1.msra.mxu0 %v42
  %81 = vmatprep.subr.mxu0 0.0
  %82 = vmatpush1.msra.mxu0 %v43
  %83 = vmatprep.subr.mxu0 0.0
  %84 = vmatpush1.msra.mxu0 0.0
  %85 = vmatprep.subr.mxu0 0.0
  %86 = vmatpush1.msra.mxu0 0.0
  %87 = vmatprep.subr.mxu0 0.0
  %88 = vmatpush1.msra.mxu0 0.0
  %89 = vmatprep.subr.mxu0 0.0
  %90 = vmatpush1.msra.mxu0 0.0
  %91 = vmatprep.subr.mxu0 0.0
  %92 = vmatpush1.msra.mxu0 0.0
  %93 = vmatprep.subr.mxu0 0.0
  %94 = vmatpush1.msra.mxu0 0.0
  %95 = vmatprep.subr.mxu0 0.0
  %96 = vmatpush1.msra.mxu0 0.0
  %97 = vmatprep.subr.mxu0 0.0
  %98 = vmatpush1.msra.mxu0 0.0
  %99 = vmatprep.subr.mxu0 0.0
  %100 = vmatpush1.msra.mxu0 0.0
  %101 = vmatprep.subr.mxu0 0.0
  %102 = vmatpush1.msra.mxu0 0.0
  %103 = vmatprep.subr.mxu0 0.0
  %104 = vmatpush1.msra.mxu0 0.0
  %105 = vmatprep.subr.mxu0 0.0
  %106 = vmatpush1.msra.mxu0 0.0
  %107 = vmatprep.subr.mxu0 0.0
  %108 = vmatpush1.msra.mxu0 0.0
  %109 = vmatprep.subr.mxu0 0.0
  %110 = vmatpush1.msra.mxu0 0.0
  %111 = vmatprep.subr.mxu0 0.0
  %112 = vmatpush1.msra.mxu0 0.0
  %113 = vmatprep.subr.mxu0 0.0
  %114 = vmatpush1.msra.mxu0 0.0
  %115 = vmatprep.mubr.f32.mxu0 0.0
  %116 = vmatmul.mubr.f32.gmra.mrb[0].mxu0 %v26
  %v117 = vpop.f32.mrb[0].mxu0
  %v118 = vadd.f32 %v49, %v117
  %v119 = vpop.f32.mrb[0].mxu0
  %120 = vmatprep.mubr.f32.mxu0 0.0
  %121 = vmatmul.mubr.f32.gmra.mrb[0].mxu0 %v27
  %v122 = vpop.f32.mrb[0].mxu0
  %v123 = vadd.f32 %v49, %v122
  %v124 = vpop.f32.mrb[0].mxu0
  %125 = vdwg.mxu0
  %v126 = vmul.f32 %v118, 0.5
  %v127 = vmul.f32 %v123, 0.5
  %v128 = vmul.f32 %v118, 0.70710677
  %v129 = vmul.f32 %v123, 0.70710677
  %v130 = verf.f32.pop %v128
  %v131 = verf.f32.pop %v129
  %v132 = vadd.f32 %v130, 1.0
  %v133 = vadd.f32 %v131, 1.0
  %v134 = vmul.f32 %v126, %v132
  %v135 = vmul.f32 %v127, %v133
  %v136 = vld [vmem:[#allocation2] sm:$0xff]
  %v137 = vld [vmem:[#allocation2 + $0x8] sm:$0xff]
  %v138 = vld [vmem:[%s3] sm:$0xff]
  %v139 = vld [vmem:[%s3 + $0x8] sm:$0xff]
  %v140 = vld [vmem:[%s3 + $0x10] sm:$0xff]
  %v141 = vld [vmem:[%s3 + $0x18] sm:$0xff]
  %v142 = vld [vmem:[%s3 + $0x20] sm:$0xff]
  %v143 = vld [vmem:[%s3 + $0x28] sm:$0xff]
  %v144 = vld [vmem:[%s3 + $0x30] sm:$0xff]
  %v145 = vld [vmem:[%s3 + $0x38] sm:$0xff]
  %v146 = vld [vmem:[%s3 + $0x40] sm:$0xff]
  %v147 = vld [vmem:[%s3 + $0x48] sm:$0xff]
  %v148 = vld [vmem:[%s3 + $0x50] sm:$0xff]
  %v149 = vld [vmem:[%s3 + $0x58] sm:$0xff]
  %v150 = vld [vmem:[%s3 + $0x60] sm:$0xff]
  %v151 = vld [vmem:[%s3 + $0x68] sm:$0xff]
  %v152 = vld [vmem:[%s3 + $0x70] sm:$0xff]
  %v153 = vld [vmem:[%s3 + $0x78] sm:$0xff]
  %154 = vmatprep.subr.mxu0 0.0
  %155 = vmatpush1.msra.mxu0 %v138
  %156 = vmatprep.subr.mxu0 0.0
  %157 = vmatpush1.msra.mxu0 %v139
  %158 = vmatprep.subr.mxu0 0.0
  %159 = vmatpush1.msra.mxu0 %v140
  %160 = vmatprep.subr.mxu0 0.0
  %161 = vmatpush1.msra.mxu0 %v141
  %162 = vmatprep.subr.mxu0 0.0
  %163 = vmatpush1.msra.mxu0 %v142
  %164 = vmatprep.subr.mxu0 0.0
  %165 = vmatpush1.msra.mxu0 %v143
  %166 = vmatprep.subr.mxu0 0.0
  %167 = vmatpush1.msra.mxu0 %v144
  %168 = vmatprep.subr.mxu0 0.0
  %169 = vmatpush1.msra.mxu0 %v145
  %170 = vmatprep.subr.mxu0 0.0
  %171 = vmatpush1.msra.mxu0 %v146
  %172 = vmatprep.subr.mxu0 0.0
  %173 = vmatpush1.msra.mxu0 %v147
  %174 = vmatprep.subr.mxu0 0.0
  %175 = vmatpush1.msra.mxu0 %v148
  %176 = vmatprep.subr.mxu0 0.0
  %177 = vmatpush1.msra.mxu0 %v149
  %178 = vmatprep.subr.mxu0 0.0
  %179 = vmatpush1.msra.mxu0 %v150
  %180 = vmatprep.subr.mxu0 0.0
  %181 = vmatpush1.msra.mxu0 %v151
  %182 = vmatprep.subr.mxu0 0.0
  %183 = vmatpush1.msra.mxu0 %v152
  %184 = vmatprep.subr.mxu0 0.0
  %185 = vmatpush1.msra.mxu0 %v153
  %186 = vmatprep.subr.mxu0 0.0
  %187 = vmatpush1.msra.mxu0 0.0
  %188 = vmatprep.subr.mxu0 0.0
  %189 = vmatpush1.msra.mxu0 0.0
  %190 = vmatprep.subr.mxu0 0.0
  %191 = vmatpush1.msra.mxu0 0.0
  %192 = vmatprep.subr.mxu0 0.0
  %193 = vmatpush1.msra.mxu0 0.0
  %194 = vmatprep.subr.mxu0 0.0
  %195 = vmatpush1.msra.mxu0 0.0
  %196 = vmatprep.subr.mxu0 0.0
  %197 = vmatpush1.msra.mxu0 0.0
  %198 = vmatprep.subr.mxu0 0.0
  %199 = vmatpush1.msra.mxu0 0.0
  %200 = vmatprep.subr.mxu0 0.0
  %201 = vmatpush1.msra.mxu0 0.0
  %202 = vmatprep.subr.mxu0 0.0
  %203 = vmatpush1.msra.mxu0 0.0
  %204 = vmatprep.subr.mxu0 0.0
  %205 = vmatpush1.msra.mxu0 0.0
  %206 = vmatprep.subr.mxu0 0.0
  %207 = vmatpush1.msra.mxu0 0.0
  %208 = vmatprep.subr.mxu0 0.0
  %209 = vmatpush1.msra.mxu0 0.0
  %210 = vmatprep.subr.mxu0 0.0
  %211 = vmatpush1.msra.mxu0 0.0
  %212 = vmatprep.subr.mxu0 0.0
  %213 = vmatpush1.msra.mxu0 0.0
  %214 = vmatprep.subr.mxu0 0.0
  %215 = vmatpush1.msra.mxu0 0.0
  %216 = vmatprep.subr.mxu0 0.0
  %217 = vmatpush1.msra.mxu0 0.0
  %218 = vmatprep.mubr.f32.mxu0 0.0
  %219 = vmatmul.mubr.f32.gmra.mrb[0].mxu0 %v134
  %v220 = vpop.f32.mrb[0].mxu0
  %v221 = vadd.f32 0.0, %v220
  %v222 = vpop.f32.mrb[0].mxu0
  %223 = vmatprep.mubr.f32.mxu0 0.0
  %224 = vmatmul.mubr.f32.gmra.mrb[0].mxu0 %v135
  %v225 = vpop.f32.mrb[0].mxu0
  %v226 = vadd.f32 0.0, %v225
  %v227 = vpop.f32.mrb[0].mxu0
  %228 = vdwg.mxu0
  %v229 = vadd.f32 %v136, %v221
  %v230 = vadd.f32 %v137, %v226
  %231 = vst [vmem:[#allocation2] sm:$0xff] %v229
  %232 = vst [vmem:[#allocation2 + $0x8] sm:$0xff] %v230
  // Predicated region
  $region26: #{feed_forward.1} parent=0 // pred_check
    %p233 = pneg %p20
  $region27: #{feed_forward.1} parent=0 // pred_check_branch
    %235 = sbr.rel (%p233) target = $region29
  $region28: #{feed_forward.1} parent=0 // pred_region
    %v236 = vld [vmem:[#allocation2] sm:$0xff]
    %v237 = vld [vmem:[#allocation2 + $0x8] sm:$0xff]
    %v238 = vld [vmem:[%s4] sm:$0x1]
    %v240 = vlaneseq
    %v241 = vshrl.u32 %v240, 7
    %v242 = vsub.s32 0, %v241
    %v243 = vrot.slane %v238, %v242
    %v245 = vadd.f32 %v236, %v243
    %v246 = vadd.f32 %v237, %v243
    %247 = vst [vmem:[%s5] sm:$0xff] %v245
    %248 = vst [vmem:[%s5 + $0x8] sm:$0xff] %v246
  $region29: #{feed_forward.1} parent=0 // pred_fallthru
    _
  // Predicated region
  $region30: #{feed_forward.1} parent=0 // pred_check
    _
  $region31: #{feed_forward.1} parent=0 // pred_check_branch
    %250 = sbr.rel (0) target = $region33
  $region32: #{feed_forward.1} parent=0 // pred_region
    _
  $region33: #{feed_forward.1} parent=0 // pred_fallthru
    _
  // Predicated region
  $region34: #{feed_forward.1} parent=0 // pred_check
    _
  $region35: #{feed_forward.1} parent=0 // pred_check_branch
    %252 = sbr.rel (0) target = $region37
  $region36: #{feed_forward.1} parent=0 // pred_region
    _
  $region37: #{feed_forward.1} parent=0 // pred_fallthru
    _

</llo_original>
